<compile_context>
chip_gen: v5e
topology: v5e:2x2
jax: 0.10.0
libtpu: 0.0.40
codegen_flags: <defaults>
</compile_context>

<pallas_src>
import functools

import jax
import jax.numpy as jnp
from jax.experimental import pallas as pl
from jax.experimental.pallas import tpu as pltpu


# ----------------------------- Pallas kernel ------------------------------- #

def _cond_match_kernel(q_ref, tbl_ref, maskb_ref,
                       w1q_ref, w1t_ref, b1_ref, w2_ref,
                       out_ref, *, S, B, L):
    """Fused CondMatchScorer forward (fully vectorized over slots and headers).

    q_ref     : (S*B, Dq)  decoder contexts (concat'd with span emb), row r = s*B + b
    tbl_ref   : (B*L, Dt)  table-header encodings, b-major: row = b*L + l
    maskb_ref : (B, L)     additive mask bias: 0.0 valid, -inf for padded headers
    w1q_ref   : (Dq, Hs)   first Linear, query-feature block (transposed)
    w1t_ref   : (Dt, Hs)   first Linear, header-feature block (transposed)
    b1_ref    : (1, Hs)
    w2_ref    : (1, Hs)    second Linear weight (row vector); its bias is dropped
                           (log-softmax is invariant to a uniform shift)
    out_ref   : (S, B, L)  masked log-softmax scores
    """
    Hs = w2_ref.shape[1]

    # Two batched projections: ALL slots / ALL headers in one MXU call each.
    pq = jnp.dot(q_ref[...], w1q_ref[...],
                 preferred_element_type=jnp.float32)                     # (S*B, Hs)
    pt = jnp.dot(tbl_ref[...], w1t_ref[...],
                 preferred_element_type=jnp.float32) + b1_ref[...]       # (B*L, Hs)

    # Broadcast-add every (slot, header) pair and apply a single tanh over the slab.
    hidden = jnp.tanh(pq.reshape(S, B, 1, Hs) + pt.reshape(B, L, Hs))    # (S, B, L, Hs)

    # Second Linear as an elementwise-mul + single Hs (lane) reduction.
    scores = jnp.sum(hidden * w2_ref[...], axis=-1) + maskb_ref[...]     # (S, B, L)

    # Masked log-softmax over the header (lane) axis.
    m = jnp.max(scores, axis=-1, keepdims=True)
    e = jnp.exp(scores - m)
    lse = m + jnp.log(jnp.sum(e, axis=-1, keepdims=True))
    out_ref[...] = scores - lse                                          # single store


# ------------------------------ wrapper ------------------------------------ #

def cond_match_scorer_forward(params, cond_context_filter, tbl_enc, tbl_mask,
                              emb_span_l=None):
    """Pallas-backed CondMatchScorer.forward.

    cond_context_filter : (S, B, R)  float32   (num_cond*3, batch, rnn_size)
    tbl_enc             : (L, B, Dt) float32   (num_table_header, batch, rnn_size)
    tbl_mask            : (B, L)     bool      True = padded header
    emb_span_l          : (S, B, E)  float32 or None
    returns             : (S, B, L)  float32   per-slot masked log-softmax over headers
    """
    q = jnp.asarray(cond_context_filter, jnp.float32)
    if emb_span_l is not None:                                   # torch.cat(..., 2)
        q = jnp.concatenate([q, jnp.asarray(emb_span_l, jnp.float32)], axis=2)
    S, B, Dq = q.shape
    tbl = jnp.asarray(tbl_enc, jnp.float32)
    L, _, Dt = tbl.shape

    W1 = jnp.asarray(params["w1"], jnp.float32)                  # (Hs, Dq + Dt)
    b1 = jnp.asarray(params["b1"], jnp.float32)                  # (Hs,)
    W2 = jnp.asarray(params["w2"], jnp.float32)                  # (1, Hs)
    Hs = W1.shape[0]

    # --- wrapper-side layout plumbing (keep the kernel free of transposes) --- #
    q2d = q.reshape(S * B, Dq)                                   # row r = s*B + b
    tbl2d = jnp.transpose(tbl, (1, 0, 2)).reshape(B * L, Dt)     # b-major: row = b*L + l
    # Split the first Linear into the query block and the header block (the PyTorch
    # layer acts on cat((q_expand, tbl_enc), 2)); transpose for row-major matmuls.
    w1q_t = W1[:, :Dq].T                                         # (Dq, Hs)
    w1t_t = W1[:, Dq:].T                                         # (Dt, Hs)
    b1_2d = b1.reshape(1, Hs)
    # masked_fill_(tbl_mask, -inf) as an additive bias.  b2 is intentionally dropped:
    # a uniform shift is a no-op under the final log-softmax.
    mask_bias = jnp.where(tbl_mask, -jnp.inf, 0.0).astype(jnp.float32)   # (B, L)

    kernel = functools.partial(_cond_match_kernel, S=S, B=B, L=L)
    vmem = lambda: pl.BlockSpec(memory_space=pltpu.MemorySpace.VMEM)

    out = pl.pallas_call(
        kernel,
        out_shape=jax.ShapeDtypeStruct((S, B, L), jnp.float32),
        in_specs=[vmem() for _ in range(7)],
        out_specs=vmem(),
    )(q2d, tbl2d, mask_bias, w1q_t, w1t_t, b1_2d, W2)
    return out


# --------------------------- pure-JAX reference ----------------------------- #

def _ref_forward(params, cond_context_filter, tbl_enc, tbl_mask, emb_span_l=None):
    """Mirrors the PyTorch module structure step-by-step (eval mode)."""
    q_all = jnp.asarray(cond_context_filter, jnp.float32)
    if emb_span_l is not None:
        q_all = jnp.concatenate([q_all, jnp.asarray(emb_span_l, jnp.float32)], axis=2)
    W1, b1 = params["w1"], params["b1"]
    W2, b2 = params["w2"], params["b2"]
    L = tbl_enc.shape[0]
    outs = []
    for s in range(q_all.shape[0]):                          # the PyTorch for-loop
        q = q_all[s]                                         # (B, Dq)
        q_exp = jnp.broadcast_to(q[None, :, :], (L,) + q.shape)
        cat = jnp.concatenate([q_exp, tbl_enc], axis=2)      # (L, B, Dq+Dt)
        hidden = jnp.tanh(cat @ W1.T + b1)                   # Linear -> Tanh (Dropout: id)
        sc = (hidden @ W2.T + b2)[..., 0].T                  # (B, L)
        sc = jnp.where(tbl_mask, -jnp.inf, sc)               # masked_fill_(-inf)
        outs.append(jax.nn.log_softmax(sc, axis=-1))         # LogSoftmax over headers
    return jnp.stack(outs, axis=0)                           # (S, B, L)


# ---------------------------------- main ------------------------------------ #

if __name__ == "__main__":
    S, B, L = 6, 4, 5          # num_cond*3 decoder slots, batch, table headers
    R, E, Dt, Hs = 32, 16, 32, 64   # cond rnn_size, span-emb dim, header dim, score_size

    key = jax.random.PRNGKey(0)
    ks = jax.random.split(key, 8)

    cond_context_filter = 0.25 * jax.random.normal(ks[0], (S, B, R), jnp.float32)
    emb_span_l = 0.25 * jax.random.normal(ks[1], (S, B, E), jnp.float32)
    tbl_enc = 0.25 * jax.random.normal(ks[2], (L, B, Dt), jnp.float32)

    # per-example number of valid headers; mask = True beyond tbl_num (padded)
    tbl_num = jnp.array([5, 4, 3, 5], dtype=jnp.int32)
    tbl_mask = jnp.arange(L)[None, :] >= tbl_num[:, None]        # (B, L) bool

    Dq = R + E
    params = {
        "w1": 0.1 * jax.random.normal(ks[3], (Hs, Dq + Dt), jnp.float32),
        "b1": 0.1 * jax.random.normal(ks[4], (Hs,), jnp.float32),
        "w2": 0.1 * jax.random.normal(ks[5], (1, Hs), jnp.float32),
        "b2": 0.1 * jax.random.normal(ks[6], (1,), jnp.float32),
    }

    out = cond_match_scorer_forward(params, cond_context_filter, tbl_enc,
                                    tbl_mask, emb_span_l)
    jax.block_until_ready(out)

    ref = _ref_forward(params, cond_context_filter, tbl_enc, tbl_mask, emb_span_l)

    assert out.shape == (S, B, L)
    # masked (padded-header) positions must be -inf in both; compare finite values only
    finite = jnp.isfinite(ref)
    assert bool(jnp.all(finite == jnp.isfinite(out)))
    assert bool(jnp.allclose(jnp.where(finite, out, 0.0),
                             jnp.where(finite, ref, 0.0),
                             atol=1e-4, rtol=1e-4))

    print("KERNEL_OK")
</pallas_src>

<mosaic_0001>
module attributes {stable_mosaic.version = 11 : i64} {
  func.func @_cond_match_kernel(%arg0: memref<24x48xf32, #tpu.memory_space<vmem>>, %arg1: memref<20x32xf32, #tpu.memory_space<vmem>>, %arg2: memref<4x5xf32, #tpu.memory_space<vmem>>, %arg3: memref<48x64xf32, #tpu.memory_space<vmem>>, %arg4: memref<32x64xf32, #tpu.memory_space<vmem>>, %arg5: memref<1x64xf32, #tpu.memory_space<vmem>>, %arg6: memref<1x64xf32, #tpu.memory_space<vmem>>, %arg7: memref<6x4x5xf32, #tpu.memory_space<vmem>>) attributes {dimension_semantics = [], scalar_prefetch = 0 : i64, scratch_operands = 0 : i64, tpu.core_type = #tpu.core_type<tc>} {
    %c0 = arith.constant 0 : index
    %c0_0 = arith.constant 0 : index
    %0 = vector.load %arg0[%c0, %c0_0] : memref<24x48xf32, #tpu.memory_space<vmem>>, vector<24x48xf32>
    %c0_1 = arith.constant 0 : index
    %c0_2 = arith.constant 0 : index
    %1 = vector.load %arg3[%c0_1, %c0_2] : memref<48x64xf32, #tpu.memory_space<vmem>>, vector<48x64xf32>
    %cst = arith.constant dense<0.000000e+00> : vector<24x64xf32>
    %2 = tpu.matmul %0, %1, %cst {dimension_numbers = #tpu.dot_dimension_numbers<[1], [0], [0], [1], [0, 0, 1, 1], [], []>} : vector<24x48xf32>, vector<48x64xf32>, vector<24x64xf32> -> vector<24x64xf32>
    %c0_3 = arith.constant 0 : index
    %c0_4 = arith.constant 0 : index
    %3 = vector.load %arg1[%c0_3, %c0_4] : memref<20x32xf32, #tpu.memory_space<vmem>>, vector<20x32xf32>
    %c0_5 = arith.constant 0 : index
    %c0_6 = arith.constant 0 : index
    %4 = vector.load %arg4[%c0_5, %c0_6] : memref<32x64xf32, #tpu.memory_space<vmem>>, vector<32x64xf32>
    %cst_7 = arith.constant dense<0.000000e+00> : vector<20x64xf32>
    %5 = tpu.matmul %3, %4, %cst_7 {dimension_numbers = #tpu.dot_dimension_numbers<[1], [0], [0], [1], [0, 0, 1, 1], [], []>} : vector<20x32xf32>, vector<32x64xf32>, vector<20x64xf32> -> vector<20x64xf32>
    %c0_8 = arith.constant 0 : index
    %c0_9 = arith.constant 0 : index
    %6 = vector.load %arg5[%c0_8, %c0_9] : memref<1x64xf32, #tpu.memory_space<vmem>>, vector<1x64xf32>
    %7 = vector.broadcast %6 : vector<1x64xf32> to vector<20x64xf32>
    %8 = arith.addf %5, %7 : vector<20x64xf32>
    %9 = vector.shape_cast %2 : vector<24x64xf32> to vector<6x4x1x64xf32>
    %10 = vector.shape_cast %8 : vector<20x64xf32> to vector<4x5x64xf32>
    %11 = vector.shape_cast %10 : vector<4x5x64xf32> to vector<1x4x5x64xf32>
    %12 = vector.broadcast %9 : vector<6x4x1x64xf32> to vector<6x4x5x64xf32>
    %13 = vector.broadcast %11 : vector<1x4x5x64xf32> to vector<6x4x5x64xf32>
    %14 = arith.addf %12, %13 : vector<6x4x5x64xf32>
    %15 = math.tanh %14 : vector<6x4x5x64xf32>
    %c0_10 = arith.constant 0 : index
    %c0_11 = arith.constant 0 : index
    %16 = vector.load %arg6[%c0_10, %c0_11] : memref<1x64xf32, #tpu.memory_space<vmem>>, vector<1x64xf32>
    %17 = vector.shape_cast %16 : vector<1x64xf32> to vector<1x1x1x64xf32>
    %18 = vector.broadcast %17 : vector<1x1x1x64xf32> to vector<6x4x5x64xf32>
    %19 = arith.mulf %15, %18 : vector<6x4x5x64xf32>
    %cst_12 = arith.constant dense<0.000000e+00> : vector<6x4x5xf32>
    %20 = vector.multi_reduction <add>, %19, %cst_12 [3] : vector<6x4x5x64xf32> to vector<6x4x5xf32>
    %c0_13 = arith.constant 0 : index
    %c0_14 = arith.constant 0 : index
    %21 = vector.load %arg2[%c0_13, %c0_14] : memref<4x5xf32, #tpu.memory_space<vmem>>, vector<4x5xf32>
    %22 = vector.shape_cast %21 : vector<4x5xf32> to vector<1x4x5xf32>
    %23 = vector.broadcast %22 : vector<1x4x5xf32> to vector<6x4x5xf32>
    %24 = arith.addf %20, %23 : vector<6x4x5xf32>
    %cst_15 = arith.constant dense<0xFF800000> : vector<6x4xf32>
    %25 = vector.multi_reduction <maximumf>, %24, %cst_15 [2] : vector<6x4x5xf32> to vector<6x4xf32>
    %26 = vector.shape_cast %25 : vector<6x4xf32> to vector<6x4x1xf32>
    %27 = vector.broadcast %26 : vector<6x4x1xf32> to vector<6x4x5xf32>
    %28 = arith.subf %24, %27 : vector<6x4x5xf32>
    %29 = math.exp %28 : vector<6x4x5xf32>
    %cst_16 = arith.constant dense<0.000000e+00> : vector<6x4xf32>
    %30 = vector.multi_reduction <add>, %29, %cst_16 [2] : vector<6x4x5xf32> to vector<6x4xf32>
    %31 = vector.shape_cast %30 : vector<6x4xf32> to vector<6x4x1xf32>
    %32 = math.log %31 : vector<6x4x1xf32>
    %33 = arith.addf %26, %32 : vector<6x4x1xf32>
    %34 = vector.broadcast %33 : vector<6x4x1xf32> to vector<6x4x5xf32>
    %35 = arith.subf %24, %34 : vector<6x4x5xf32>
    %c0_17 = arith.constant 0 : index
    %c0_18 = arith.constant 0 : index
    %c0_19 = arith.constant 0 : index
    %36 = vector.load %arg7[%c0_17, %c0_18, %c0_19] : memref<6x4x5xf32, #tpu.memory_space<vmem>>, vector<6x4x5xf32>
    tpu.vector_store %arg7[%c0_17, %c0_18, %c0_19], %35 {strides = array<i32>} : memref<6x4x5xf32, #tpu.memory_space<vmem>>, vector<6x4x5xf32>,
    return
  }
}

</mosaic_0001>

<llo_original>
// kernel: tpu_custom_call.1
$region0: #{tpu_custom_call.1}
  #allocation0 [shape = 'u32[]', space=smem, size = 0x4, offset = 0x4, fixed_abs, tag = 'smem constant byte address 0x4 - core index']
  #allocation1 [shape = 'u32[72,128]{1,0:T(1,128)}', space=vmem, size = 0x9000, scoped, tag = 'internal scratch']
  %s0 = inlined_call_operand.hbm [shape: f32[24,48], index: 0, kind: input, shape index: {}]
  %s1 = inlined_call_operand.hbm [shape: f32[20,32], index: 1, kind: input, shape index: {}]
  %s2 = inlined_call_operand.hbm [shape: f32[4,5], index: 2, kind: input, shape index: {}]
  %s3 = inlined_call_operand.hbm [shape: f32[48,64], index: 3, kind: input, shape index: {}]
  %s4 = inlined_call_operand.hbm [shape: f32[32,64], index: 4, kind: input, shape index: {}]
  %s5 = inlined_call_operand.vmem [shape: f32[1,64], index: 5, kind: input, shape index: {}]
  %s6 = inlined_call_operand.vmem [shape: f32[1,64], index: 6, kind: input, shape index: {}]
  %s7 = inlined_call_operand.vmem [shape: f32[6,4,5], index: 7, kind: output, shape index: {}]
  %s8 = sld [smem:[#allocation0]]
  $region58: #{tpu_custom_call.1} parent=0
    _
  %s10 = ssub.s32 1, %s8
  %s11 = scalar_select 0, %s10, %s8
  $region1: #{tpu_custom_call.1} parent=0
    #allocation2 [shape = 'u8[12288]{0}', space=vmem, size = 0x3000, scoped, tag = 'input window, operand 0, single buffered']
    #allocation3 [shape = 's32[1]{0}', space=sflag, size = 0x4, scoped, tag = 'scoped memory for tpu_custom_call.1']
    #allocation4 [shape = 'u8[12288]{0}', space=vmem, size = 0x3000, scoped, tag = 'input window, operand 1, single buffered']
    #allocation5 [shape = 's32[1]{0}', space=sflag, size = 0x4, scoped, tag = 'scoped memory for tpu_custom_call.1']
    #allocation6 [shape = 'u8[2048]{0}', space=vmem, size = 0x800, scoped, tag = 'input window, operand 2, single buffered']
    #allocation7 [shape = 'u8[24576]{0}', space=vmem, size = 0x6000, scoped, tag = 'input window, operand 3, single buffered']
    #allocation8 [shape = 's32[1]{0}', space=sflag, size = 0x4, scoped, tag = 'scoped memory for tpu_custom_call.1']
    #allocation9 [shape = 'u8[16384]{0}', space=vmem, size = 0x4000, scoped, tag = 'input window, operand 4, single buffered']
    %12 = vsyncpa [#allocation3], 0
    %13 = vsyncpa [#allocation5], 0
    %14 = vsyncpa [#allocation8], 0
    // Predicated region
    $region2: #{tpu_custom_call.1} parent=1 // pred_check
      _
    $region3: #{tpu_custom_call.1} parent=1 // pred_check_branch
      %16 = sbr.rel (0) target = $region5
    $region4: #{tpu_custom_call.1} parent=1 // pred_region
      %18 = vsyncadd [#allocation3], 0
      %s19 = sshll.u32 %s0, 4
      %s20 = int_to_ptr.hbm [resolvable:$true] %s19
      %s21 = sshll.u32 [#allocation2], 4
      %s22 = int_to_ptr.vmem [resolvable:$true] %s21
      %27 = dma.hbm_to_vmem [thread:$0]  %s20, 384, %s22, [#allocation3], 128, 128, 8
    $region5: #{tpu_custom_call.1} parent=1 // pred_fallthru
      _
    // Predicated region
    $region6: #{tpu_custom_call.1} parent=1 // pred_check
      _
    $region7: #{tpu_custom_call.1} parent=1 // pred_check_branch
      %29 = sbr.rel (0) target = $region9
    $region8: #{tpu_custom_call.1} parent=1 // pred_region
      %31 = vsyncadd [#allocation5], 0
      %s32 = sshll.u32 %s1, 4
      %s33 = int_to_ptr.hbm [resolvable:$true] %s32
      %s34 = sshll.u32 [#allocation4], 4
      %s35 = int_to_ptr.vmem [resolvable:$true] %s34
      %40 = dma.hbm_to_vmem [thread:$0]  %s33, 384, %s35, [#allocation5], 128, 128, 8
    $region9: #{tpu_custom_call.1} parent=1 // pred_fallthru
      _
    // Predicated region
    $region10: #{tpu_custom_call.1} parent=1 // pred_check
      _
    $region11: #{tpu_custom_call.1} parent=1 // pred_check_branch
      %42 = sbr.rel (0) target = $region13
    $region12: #{tpu_custom_call.1} parent=1 // pred_region
      %44 = vsyncadd [#allocation5], 0
      %s46 = sshll.u32 %s2, 4
      %s47 = int_to_ptr.hbm [resolvable:$true] %s46
      %s48 = sshll.u32 [#allocation6], 4
      %s49 = int_to_ptr.vmem [resolvable:$true] %s48
      %51 = dma.hbm_to_vmem [thread:$0]  %s47, 64, %s49, [#allocation5]
    $region13: #{tpu_custom_call.1} parent=1 // pred_fallthru
      _
    // Predicated region
    $region14: #{tpu_custom_call.1} parent=1 // pred_check
      _
    $region15: #{tpu_custom_call.1} parent=1 // pred_check_branch
      %53 = sbr.rel (0) target = $region17
    $region16: #{tpu_custom_call.1} parent=1 // pred_region
      %55 = vsyncadd [#allocation8], 0
      %s56 = sshll.u32 %s3, 4
      %s57 = int_to_ptr.hbm [resolvable:$true] %s56
      %s58 = sshll.u32 [#allocation7], 4
      %s59 = int_to_ptr.vmem [resolvable:$true] %s58
      %64 = dma.hbm_to_vmem [thread:$0]  %s57, 768, %s59, [#allocation8], 128, 128, 8
    $region17: #{tpu_custom_call.1} parent=1 // pred_fallthru
      _
    // Predicated region
    $region18: #{tpu_custom_call.1} parent=1 // pred_check
      _
    $region19: #{tpu_custom_call.1} parent=1 // pred_check_branch
      %66 = sbr.rel (0) target = $region21
    $region20: #{tpu_custom_call.1} parent=1 // pred_region
      %68 = vsyncadd [#allocation8], 0
      %s69 = sshll.u32 %s4, 4
      %s70 = int_to_ptr.hbm [resolvable:$true] %s69
      %s71 = sshll.u32 [#allocation9], 4
      %s72 = int_to_ptr.vmem [resolvable:$true] %s71
      %77 = dma.hbm_to_vmem [thread:$0]  %s70, 512, %s72, [#allocation8], 128, 128, 8
    $region21: #{tpu_custom_call.1} parent=1 // pred_fallthru
      _
    // Predicated region
    $region22: #{tpu_custom_call.1} parent=1 // pred_check
      _
    $region23: #{tpu_custom_call.1} parent=1 // pred_check_branch
      %79 = sbr.rel (0) target = $region25
    $region24: #{tpu_custom_call.1} parent=1 // pred_region
      _
    $region25: #{tpu_custom_call.1} parent=1 // pred_fallthru
      _
    // Predicated region
    $region26: #{tpu_custom_call.1} parent=1 // pred_check
      _
    $region27: #{tpu_custom_call.1} parent=1 // pred_check_branch
      %81 = sbr.rel (0) target = $region29
    $region28: #{tpu_custom_call.1} parent=1 // pred_region
      _
    $region29: #{tpu_custom_call.1} parent=1 // pred_fallthru
      _
    // Predicated region
    $region30: #{tpu_custom_call.1} parent=1 // pred_check
      _
    $region31: #{tpu_custom_call.1} parent=1 // pred_check_branch
      %83 = sbr.rel (0) target = $region33
    $region32: #{tpu_custom_call.1} parent=1 // pred_region
      %85 = dma.done [#allocation3], 384
    $region33: #{tpu_custom_call.1} parent=1 // pred_fallthru
      _
    // Predicated region
    $region34: #{tpu_custom_call.1} parent=1 // pred_check
      _
    $region35: #{tpu_custom_call.1} parent=1 // pred_check_branch
      %87 = sbr.rel (0) target = $region37
    $region36: #{tpu_custom_call.1} parent=1 // pred_region
      %89 = dma.done [#allocation5], 384
    $region37: #{tpu_custom_call.1} parent=1 // pred_fallthru
      _
    // Predicated region
    $region38: #{tpu_custom_call.1} parent=1 // pred_check
      _
    $region39: #{tpu_custom_call.1} parent=1 // pred_check_branch
      %91 = sbr.rel (0) target = $region41
    $region40: #{tpu_custom_call.1} parent=1 // pred_region
      %93 = dma.done [#allocation5], 64
    $region41: #{tpu_custom_call.1} parent=1 // pred_fallthru
      _
    // Predicated region
    $region42: #{tpu_custom_call.1} parent=1 // pred_check
      _
    $region43: #{tpu_custom_call.1} parent=1 // pred_check_branch
      %95 = sbr.rel (0) target = $region45
    $region44: #{tpu_custom_call.1} parent=1 // pred_region
      %97 = dma.done [#allocation8], 768
    $region45: #{tpu_custom_call.1} parent=1 // pred_fallthru
      _
    // Predicated region
    $region46: #{tpu_custom_call.1} parent=1 // pred_check
      _
    $region47: #{tpu_custom_call.1} parent=1 // pred_check_branch
      %99 = sbr.rel (0) target = $region49
    $region48: #{tpu_custom_call.1} parent=1 // pred_region
      %101 = dma.done [#allocation8], 512
    $region49: #{tpu_custom_call.1} parent=1 // pred_fallthru
      _
    %v102 = vld [vmem:[#allocation2] sm:$0xff]
    %v103 = vld [vmem:[#allocation2 + $0x8] sm:$0xff]
    %v104 = vld [vmem:[#allocation2 + $0x10] sm:$0xff]
    %v105 = vld [vmem:[#allocation7] sm:$0xff]
    %v106 = vld [vmem:[#allocation7 + $0x8] sm:$0xff]
    %v107 = vld [vmem:[#allocation7 + $0x10] sm:$0xff]
    %v108 = vld [vmem:[#allocation7 + $0x18] sm:$0xff]
    %v109 = vld [vmem:[#allocation7 + $0x20] sm:$0xff]
    %v110 = vld [vmem:[#allocation7 + $0x28] sm:$0xff]
    %vm111 = vcmask 392192
    %v113 = vsel %vm111, %v102, 0
    %v116 = vsel %vm111, %v103, 0
    %v119 = vsel %vm111, %v104, 0
    %121 = vmatpush.msra.mxu0 0.0
    %122 = vmatpush.msra.mxu0 0.0
    %123 = vmatpush.msra.mxu0 0.0
    %124 = vmatpush.msra.mxu0 0.0
    %125 = vmatpush.msra.mxu0 0.0
    %126 = vmatpush.msra.mxu0 0.0
    %127 = vmatpush.msra.mxu0 0.0
    %128 = vmatpush.msra.mxu0 0.0
    %129 = vmatpush.msra.mxu0 0.0
    %130 = vmatpush.msra.mxu0 0.0
    %131 = vmatpush.msra.mxu0 %v110
    %132 = vmatpush.msra.mxu0 %v109
    %133 = vmatpush.msra.mxu0 %v108
    %134 = vmatpush.msra.mxu0 %v107
    %135 = vmatpush.msra.mxu0 %v106
    %136 = vmatpush.msra.mxu0 %v105
    %137 = vmatmul.f32.gmra.mxu0 %v113
    %v138 = vpop.f32.mrf.mxu0
    %v139 = vadd.f32 0.0, %v138
    %140 = vmatmul.f32.gmra.mxu0 %v116
    %v141 = vpop.f32.mrf.mxu0
    %v142 = vadd.f32 0.0, %v141
    %143 = vmatmul.f32.gmra.mxu0 %v119
    %v144 = vpop.f32.mrf.mxu0
    %v145 = vadd.f32 0.0, %v144
    %146 = vdwg.mxu0
    %v147 = vld [vmem:[#allocation4] sm:$0xff]
    %v148 = vld [vmem:[#allocation4 + $0x8] sm:$0xff]
    %v149 = vld [vmem:[#allocation4 + $0x10] sm:$0xf]
    %v150 = vld [vmem:[#allocation9] sm:$0xff]
    %v151 = vld [vmem:[#allocation9 + $0x8] sm:$0xff]
    %v152 = vld [vmem:[#allocation9 + $0x10] sm:$0xff]
    %v153 = vld [vmem:[#allocation9 + $0x18] sm:$0xff]
    %v154 = vld [vmem:[%s5] sm:$0x1]
    %v156 = vperm.slane %v154, 0
    %vm158 = vcmask 261120
    %v160 = vsel %vm158, %v147, 0
    %v163 = vsel %vm158, %v148, 0
    %v166 = vsel %vm158, %v149, 0
    %168 = vmatpush.msra.mxu0 0.0
    %169 = vmatpush.msra.mxu0 0.0
    %170 = vmatpush.msra.mxu0 0.0
    %171 = vmatpush.msra.mxu0 0.0
    %172 = vmatpush.msra.mxu0 0.0
    %173 = vmatpush.msra.mxu0 0.0
    %174 = vmatpush.msra.mxu0 0.0
    %175 = vmatpush.msra.mxu0 0.0
    %176 = vmatpush.msra.mxu0 0.0
    %177 = vmatpush.msra.mxu0 0.0
    %178 = vmatpush.msra.mxu0 0.0
    %179 = vmatpush.msra.mxu0 0.0
    %180 = vmatpush.msra.mxu0 %v153
    %181 = vmatpush.msra.mxu0 %v152
    %182 = vmatpush.msra.mxu0 %v151
    %183 = vmatpush.msra.mxu0 %v150
    %184 = vmatmul.f32.gmra.mxu0 %v160
    %v185 = vpop.f32.mrf.mxu0
    %v186 = vadd.f32 %v156, %v185
    %187 = vmatmul.f32.gmra.mxu0 %v163
    %v188 = vpop.f32.mrf.mxu0
    %v189 = vadd.f32 %v156, %v188
    %190 = vmatmul.f32.gmra.mxu0 %v166
    %v191 = vpop.f32.mrf.mxu0
    %v192 = vadd.f32 %v156, %v191
    %193 = vdwg.mxu0
    %v197 = vrot.slane %v139, 1
    %v198 = vrot.slane %v139, 2
    %v199 = vrot.slane %v139, 3
    %v200 = vrot.slane %v139, 4
    %v201 = vrot.slane %v139, 5
    %v202 = vrot.slane %v139, 6
    %v203 = vrot.slane %v139, 7
    %v204 = vrot.slane %v142, 1
    %v205 = vrot.slane %v142, 2
    %v206 = vrot.slane %v142, 3
    %v207 = vrot.slane %v142, 4
    %v208 = vrot.slane %v142, 5
    %v209 = vrot.slane %v142, 6
    %v210 = vrot.slane %v142, 7
    %v211 = vrot.slane %v145, 1
    %v212 = vrot.slane %v145, 2
    %v213 = vrot.slane %v145, 3
    %v214 = vrot.slane %v145, 4
    %v215 = vrot.slane %v145, 5
    %v216 = vrot.slane %v145, 6
    %v217 = vrot.slane %v145, 7
    %v218 = vperm.slane %v139, 0
    %v219 = vperm.slane %v197, 0
    %v220 = vperm.slane %v198, 0
    %v221 = vperm.slane %v199, 0
    %v222 = vperm.slane %v200, 0
    %v223 = vperm.slane %v201, 0
    %v224 = vperm.slane %v202, 0
    %v225 = vperm.slane %v203, 0
    %v226 = vperm.slane %v142, 0
    %v227 = vperm.slane %v204, 0
    %v228 = vperm.slane %v205, 0
    %v229 = vperm.slane %v206, 0
    %v230 = vperm.slane %v207, 0
    %v231 = vperm.slane %v208, 0
    %v232 = vperm.slane %v209, 0
    %v233 = vperm.slane %v210, 0
    %v234 = vperm.slane %v145, 0
    %v235 = vperm.slane %v211, 0
    %v236 = vperm.slane %v212, 0
    %v237 = vperm.slane %v213, 0
    %v238 = vperm.slane %v214, 0
    %v239 = vperm.slane %v215, 0
    %v240 = vperm.slane %v216, 0
    %v241 = vperm.slane %v217, 0
    %v269 = vrot.slane %v186, 1
    %v270 = vrot.slane %v186, 2
    %v271 = vrot.slane %v186, 3
    %v272 = vrot.slane %v186, 4
    %v273 = vrot.slane %v186, 5
    %v274 = vrot.slane %v186, 6
    %v275 = vrot.slane %v186, 7
    %v276 = vrot.slane %v189, 1
    %v277 = vrot.slane %v189, 2
    %v278 = vrot.slane %v189, 3
    %v279 = vrot.slane %v189, 4
    %v280 = vrot.slane %v189, 5
    %v281 = vrot.slane %v189, 6
    %v282 = vrot.slane %v189, 7
    %v283 = vrot.slane %v192, 1
    %v284 = vrot.slane %v192, 2
    %v285 = vrot.slane %v192, 3
    %286 = vst [vmem:[#allocation1] ss:$9 sm:$0xff] %v186
    %s287 = scalar_lea.vmem [#allocation1], 1
    %288 = vst [vmem:[%s287] ss:$9 sm:$0xff] %v269
    %s289 = scalar_lea.vmem [#allocation1], 2
    %290 = vst [vmem:[%s289] ss:$9 sm:$0xff] %v270
    %s291 = scalar_lea.vmem [#allocation1], 3
    %292 = vst [vmem:[%s291] ss:$9 sm:$0xff] %v271
    %s293 = scalar_lea.vmem [#allocation1], 4
    %294 = vst [vmem:[%s293] ss:$9 sm:$0xff] %v272
    %v295 = vld [vmem:[#allocation1] sm:$0xff]
    %296 = vst [vmem:[#allocation1] ss:$9 sm:$0xff] %v273
    %297 = vst [vmem:[%s287] ss:$9 sm:$0xff] %v274
    %298 = vst [vmem:[%s289] ss:$9 sm:$0xff] %v275
    %299 = vst [vmem:[%s291] ss:$9 sm:$0xff] %v189
    %300 = vst [vmem:[%s293] ss:$9 sm:$0xff] %v276
    %v301 = vld [vmem:[#allocation1] sm:$0xff]
    %302 = vst [vmem:[#allocation1] ss:$9 sm:$0xff] %v277
    %303 = vst [vmem:[%s287] ss:$9 sm:$0xff] %v278
    %304 = vst [vmem:[%s289] ss:$9 sm:$0xff] %v279
    %305 = vst [vmem:[%s291] ss:$9 sm:$0xff] %v280
    %306 = vst [vmem:[%s293] ss:$9 sm:$0xff] %v281
    %v307 = vld [vmem:[#allocation1] sm:$0xff]
    %308 = vst [vmem:[#allocation1] ss:$9 sm:$0xff] %v282
    %309 = vst [vmem:[%s287] ss:$9 sm:$0xff] %v192
    %310 = vst [vmem:[%s289] ss:$9 sm:$0xff] %v283
    %311 = vst [vmem:[%s291] ss:$9 sm:$0xff] %v284
    %312 = vst [vmem:[%s293] ss:$9 sm:$0xff] %v285
    %v313 = vld [vmem:[#allocation1] sm:$0xff]
    %314 = vst [vmem:[#allocation1] ss:$9 sm:$0xff] %v186
    %315 = vst [vmem:[%s287] ss:$9 sm:$0xff] %v269
    %316 = vst [vmem:[%s289] ss:$9 sm:$0xff] %v270
    %317 = vst [vmem:[%s291] ss:$9 sm:$0xff] %v271
    %318 = vst [vmem:[%s293] ss:$9 sm:$0xff] %v272
    %v319 = vld [vmem:[#allocation1] sm:$0xff]
    %320 = vst [vmem:[#allocation1] ss:$9 sm:$0xff] %v273
    %321 = vst [vmem:[%s287] ss:$9 sm:$0xff] %v274
    %322 = vst [vmem:[%s289] ss:$9 sm:$0xff] %v275
    %323 = vst [vmem:[%s291] ss:$9 sm:$0xff] %v189
    %324 = vst [vmem:[%s293] ss:$9 sm:$0xff] %v276
    %v325 = vld [vmem:[#allocation1] sm:$0xff]
    %326 = vst [vmem:[#allocation1] ss:$9 sm:$0xff] %v277
    %327 = vst [vmem:[%s287] ss:$9 sm:$0xff] %v278
    %328 = vst [vmem:[%s289] ss:$9 sm:$0xff] %v279
    %329 = vst [vmem:[%s291] ss:$9 sm:$0xff] %v280
    %330 = vst [vmem:[%s293] ss:$9 sm:$0xff] %v281
    %v331 = vld [vmem:[#allocation1] sm:$0xff]
    %332 = vst [vmem:[#allocation1] ss:$9 sm:$0xff] %v282
    %333 = vst [vmem:[%s287] ss:$9 sm:$0xff] %v192
    %334 = vst [vmem:[%s289] ss:$9 sm:$0xff] %v283
    %335 = vst [vmem:[%s291] ss:$9 sm:$0xff] %v284
    %336 = vst [vmem:[%s293] ss:$9 sm:$0xff] %v285
    %v337 = vld [vmem:[#allocation1] sm:$0xff]
    %338 = vst [vmem:[#allocation1] ss:$9 sm:$0xff] %v186
    %339 = vst [vmem:[%s287] ss:$9 sm:$0xff] %v269
    %340 = vst [vmem:[%s289] ss:$9 sm:$0xff] %v270
    %341 = vst [vmem:[%s291] ss:$9 sm:$0xff] %v271
    %342 = vst [vmem:[%s293] ss:$9 sm:$0xff] %v272
    %v343 = vld [vmem:[#allocation1] sm:$0xff]
    %344 = vst [vmem:[#allocation1] ss:$9 sm:$0xff] %v273
    %345 = vst [vmem:[%s287] ss:$9 sm:$0xff] %v274
    %346 = vst [vmem:[%s289] ss:$9 sm:$0xff] %v275
    %347 = vst [vmem:[%s291] ss:$9 sm:$0xff] %v189
    %348 = vst [vmem:[%s293] ss:$9 sm:$0xff] %v276
    %v349 = vld [vmem:[#allocation1] sm:$0xff]
    %350 = vst [vmem:[#allocation1] ss:$9 sm:$0xff] %v277
    %351 = vst [vmem:[%s287] ss:$9 sm:$0xff] %v278
    %352 = vst [vmem:[%s289] ss:$9 sm:$0xff] %v279
    %353 = vst [vmem:[%s291] ss:$9 sm:$0xff] %v280
    %354 = vst [vmem:[%s293] ss:$9 sm:$0xff] %v281
    %v355 = vld [vmem:[#allocation1] sm:$0xff]
    %356 = vst [vmem:[#allocation1] ss:$9 sm:$0xff] %v282
    %357 = vst [vmem:[%s287] ss:$9 sm:$0xff] %v192
    %358 = vst [vmem:[%s289] ss:$9 sm:$0xff] %v283
    %359 = vst [vmem:[%s291] ss:$9 sm:$0xff] %v284
    %360 = vst [vmem:[%s293] ss:$9 sm:$0xff] %v285
    %v361 = vld [vmem:[#allocation1] sm:$0xff]
    %362 = vst [vmem:[#allocation1] ss:$9 sm:$0xff] %v186
    %363 = vst [vmem:[%s287] ss:$9 sm:$0xff] %v269
    %364 = vst [vmem:[%s289] ss:$9 sm:$0xff] %v270
    %365 = vst [vmem:[%s291] ss:$9 sm:$0xff] %v271
    %366 = vst [vmem:[%s293] ss:$9 sm:$0xff] %v272
    %v367 = vld [vmem:[#allocation1] sm:$0xff]
    %368 = vst [vmem:[#allocation1] ss:$9 sm:$0xff] %v273
    %369 = vst [vmem:[%s287] ss:$9 sm:$0xff] %v274
    %370 = vst [vmem:[%s289] ss:$9 sm:$0xff] %v275
    %371 = vst [vmem:[%s291] ss:$9 sm:$0xff] %v189
    %372 = vst [vmem:[%s293] ss:$9 sm:$0xff] %v276
    %v373 = vld [vmem:[#allocation1] sm:$0xff]
    %374 = vst [vmem:[#allocation1] ss:$9 sm:$0xff] %v277
    %375 = vst [vmem:[%s287] ss:$9 sm:$0xff] %v278
    %376 = vst [vmem:[%s289] ss:$9 sm:$0xff] %v279
    %377 = vst [vmem:[%s291] ss:$9 sm:$0xff] %v280
    %378 = vst [vmem:[%s293] ss:$9 sm:$0xff] %v281
    %v379 = vld [vmem:[#allocation1] sm:$0xff]
    %380 = vst [vmem:[#allocation1] ss:$9 sm:$0xff] %v282
    %381 = vst [vmem:[%s287] ss:$9 sm:$0xff] %v192
    %382 = vst [vmem:[%s289] ss:$9 sm:$0xff] %v283
    %383 = vst [vmem:[%s291] ss:$9 sm:$0xff] %v284
    %384 = vst [vmem:[%s293] ss:$9 sm:$0xff] %v285
    %v385 = vld [vmem:[#allocation1] sm:$0xff]
    %386 = vst [vmem:[#allocation1] ss:$9 sm:$0xff] %v186
    %387 = vst [vmem:[%s287] ss:$9 sm:$0xff] %v269
    %388 = vst [vmem:[%s289] ss:$9 sm:$0xff] %v270
    %389 = vst [vmem:[%s291] ss:$9 sm:$0xff] %v271
    %390 = vst [vmem:[%s293] ss:$9 sm:$0xff] %v272
    %v391 = vld [vmem:[#allocation1] sm:$0xff]
    %392 = vst [vmem:[#allocation1] ss:$9 sm:$0xff] %v273
    %393 = vst [vmem:[%s287] ss:$9 sm:$0xff] %v274
    %394 = vst [vmem:[%s289] ss:$9 sm:$0xff] %v275
    %395 = vst [vmem:[%s291] ss:$9 sm:$0xff] %v189
    %396 = vst [vmem:[%s293] ss:$9 sm:$0xff] %v276
    %v397 = vld [vmem:[#allocation1] sm:$0xff]
    %398 = vst [vmem:[#allocation1] ss:$9 sm:$0xff] %v277
    %399 = vst [vmem:[%s287] ss:$9 sm:$0xff] %v278
    %400 = vst [vmem:[%s289] ss:$9 sm:$0xff] %v279
    %401 = vst [vmem:[%s291] ss:$9 sm:$0xff] %v280
    %402 = vst [vmem:[%s293] ss:$9 sm:$0xff] %v281
    %v403 = vld [vmem:[#allocation1] sm:$0xff]
    %404 = vst [vmem:[#allocation1] ss:$9 sm:$0xff] %v282
    %405 = vst [vmem:[%s287] ss:$9 sm:$0xff] %v192
    %406 = vst [vmem:[%s289] ss:$9 sm:$0xff] %v283
    %407 = vst [vmem:[%s291] ss:$9 sm:$0xff] %v284
    %408 = vst [vmem:[%s293] ss:$9 sm:$0xff] %v285
    %v409 = vld [vmem:[#allocation1] sm:$0xff]
    %410 = vst [vmem:[#allocation1] ss:$9 sm:$0xff] %v186
    %411 = vst [vmem:[%s287] ss:$9 sm:$0xff] %v269
    %412 = vst [vmem:[%s289] ss:$9 sm:$0xff] %v270
    %413 = vst [vmem:[%s291] ss:$9 sm:$0xff] %v271
    %414 = vst [vmem:[%s293] ss:$9 sm:$0xff] %v272
    %v415 = vld [vmem:[#allocation1] sm:$0xff]
    %416 = vst [vmem:[#allocation1] ss:$9 sm:$0xff] %v273
    %417 = vst [vmem:[%s287] ss:$9 sm:$0xff] %v274
    %418 = vst [vmem:[%s289] ss:$9 sm:$0xff] %v275
    %419 = vst [vmem:[%s291] ss:$9 sm:$0xff] %v189
    %420 = vst [vmem:[%s293] ss:$9 sm:$0xff] %v276
    %v421 = vld [vmem:[#allocation1] sm:$0xff]
    %422 = vst [vmem:[#allocation1] ss:$9 sm:$0xff] %v277
    %423 = vst [vmem:[%s287] ss:$9 sm:$0xff] %v278
    %424 = vst [vmem:[%s289] ss:$9 sm:$0xff] %v279
    %425 = vst [vmem:[%s291] ss:$9 sm:$0xff] %v280
    %426 = vst [vmem:[%s293] ss:$9 sm:$0xff] %v281
    %v427 = vld [vmem:[#allocation1] sm:$0xff]
    %428 = vst [vmem:[#allocation1] ss:$9 sm:$0xff] %v282
    %429 = vst [vmem:[%s287] ss:$9 sm:$0xff] %v192
    %430 = vst [vmem:[%s289] ss:$9 sm:$0xff] %v283
    %431 = vst [vmem:[%s291] ss:$9 sm:$0xff] %v284
    %432 = vst [vmem:[%s293] ss:$9 sm:$0xff] %v285
    %v433 = vld [vmem:[#allocation1] sm:$0xff]
    %v458 = vadd.f32 %v218, %v295
    %v459 = vadd.f32 %v219, %v301
    %v460 = vadd.f32 %v220, %v307
    %v461 = vadd.f32 %v221, %v313
    %v462 = vadd.f32 %v222, %v319
    %v463 = vadd.f32 %v223, %v325
    %v464 = vadd.f32 %v224, %v331
    %v465 = vadd.f32 %v225, %v337
    %v466 = vadd.f32 %v226, %v343
    %v467 = vadd.f32 %v227, %v349
    %v468 = vadd.f32 %v228, %v355
    %v469 = vadd.f32 %v229, %v361
    %v470 = vadd.f32 %v230, %v367
    %v471 = vadd.f32 %v231, %v373
    %v472 = vadd.f32 %v232, %v379
    %v473 = vadd.f32 %v233, %v385
    %v474 = vadd.f32 %v234, %v391
    %v475 = vadd.f32 %v235, %v397
    %v476 = vadd.f32 %v236, %v403
    %v477 = vadd.f32 %v237, %v409
    %v478 = vadd.f32 %v238, %v415
    %v479 = vadd.f32 %v239, %v421
    %v480 = vadd.f32 %v240, %v427
    %v481 = vadd.f32 %v241, %v433
    %v482 = vtanh.pop %v458
    %v483 = vtanh.pop %v459
    %v484 = vtanh.pop %v460
    %v485 = vtanh.pop %v461
    %v486 = vtanh.pop %v462
    %v487 = vtanh.pop %v463
    %v488 = vtanh.pop %v464
    %v489 = vtanh.pop %v465
    %v490 = vtanh.pop %v466
    %v491 = vtanh.pop %v467
    %v492 = vtanh.pop %v468
    %v493 = vtanh.pop %v469
    %v494 = vtanh.pop %v470
    %v495 = vtanh.pop %v471
    %v496 = vtanh.pop %v472
    %v497 = vtanh.pop %v473
    %v498 = vtanh.pop %v474
    %v499 = vtanh.pop %v475
    %v500 = vtanh.pop %v476
    %v501 = vtanh.pop %v477
    %v502 = vtanh.pop %v478
    %v503 = vtanh.pop %v479
    %v504 = vtanh.pop %v480
    %v505 = vtanh.pop %v481
    %v506 = vld [vmem:[%s6] sm:$0x1]
    %v508 = vperm.slane %v506, 0
    %v510 = vmul.f32 %v482, %v508
    %v511 = vmul.f32 %v483, %v508
    %v512 = vmul.f32 %v484, %v508
    %v513 = vmul.f32 %v485, %v508
    %v514 = vmul.f32 %v486, %v508
    %v515 = vmul.f32 %v487, %v508
    %v516 = vmul.f32 %v488, %v508
    %v517 = vmul.f32 %v489, %v508
    %v518 = vmul.f32 %v490, %v508
    %v519 = vmul.f32 %v491, %v508
    %v520 = vmul.f32 %v492, %v508
    %v521 = vmul.f32 %v493, %v508
    %v522 = vmul.f32 %v494, %v508
    %v523 = vmul.f32 %v495, %v508
    %v524 = vmul.f32 %v496, %v508
    %v525 = vmul.f32 %v497, %v508
    %v526 = vmul.f32 %v498, %v508
    %v527 = vmul.f32 %v499, %v508
    %v528 = vmul.f32 %v500, %v508
    %v529 = vmul.f32 %v501, %v508
    %v530 = vmul.f32 %v502, %v508
    %v531 = vmul.f32 %v503, %v508
    %v532 = vmul.f32 %v504, %v508
    %v533 = vmul.f32 %v505, %v508
    %vm534 = vcmask 520192
    %v535 = vsel %vm534, %v510, 0.0
    %536 = vadd.xlane.f32.xlu0 %v535
    %v537 = vpop.xlane.xlu0 %536
    %v538 = vsel %vm534, %v511, 0.0
    %539 = vadd.xlane.f32.xlu0 %v538
    %v540 = vpop.xlane.xlu0 %539
    %v541 = vsel %vm534, %v512, 0.0
    %542 = vadd.xlane.f32.xlu0 %v541
    %v543 = vpop.xlane.xlu0 %542
    %v544 = vsel %vm534, %v513, 0.0
    %545 = vadd.xlane.f32.xlu0 %v544
    %v546 = vpop.xlane.xlu0 %545
    %v547 = vsel %vm534, %v514, 0.0
    %548 = vadd.xlane.f32.xlu0 %v547
    %v549 = vpop.xlane.xlu0 %548
    %v550 = vsel %vm534, %v515, 0.0
    %551 = vadd.xlane.f32.xlu0 %v550
    %v552 = vpop.xlane.xlu0 %551
    %v553 = vsel %vm534, %v516, 0.0
    %554 = vadd.xlane.f32.xlu0 %v553
    %v555 = vpop.xlane.xlu0 %554
    %v556 = vsel %vm534, %v517, 0.0
    %557 = vadd.xlane.f32.xlu0 %v556
    %v558 = vpop.xlane.xlu0 %557
    %v559 = vsel %vm534, %v518, 0.0
    %560 = vadd.xlane.f32.xlu0 %v559
    %v561 = vpop.xlane.xlu0 %560
    %v562 = vsel %vm534, %v519, 0.0
    %563 = vadd.xlane.f32.xlu0 %v562
    %v564 = vpop.xlane.xlu0 %563
    %v565 = vsel %vm534, %v520, 0.0
    %566 = vadd.xlane.f32.xlu0 %v565
    %v567 = vpop.xlane.xlu0 %566
    %v568 = vsel %vm534, %v521, 0.0
    %569 = vadd.xlane.f32.xlu0 %v568
    %v570 = vpop.xlane.xlu0 %569
    %v571 = vsel %vm534, %v522, 0.0
    %572 = vadd.xlane.f32.xlu0 %v571
    %v573 = vpop.xlane.xlu0 %572
    %v574 = vsel %vm534, %v523, 0.0
    %575 = vadd.xlane.f32.xlu0 %v574
    %v576 = vpop.xlane.xlu0 %575
    %v577 = vsel %vm534, %v524, 0.0
    %578 = vadd.xlane.f32.xlu0 %v577
    %v579 = vpop.xlane.xlu0 %578
    %v580 = vsel %vm534, %v525, 0.0
    %581 = vadd.xlane.f32.xlu0 %v580
    %v582 = vpop.xlane.xlu0 %581
    %v583 = vsel %vm534, %v526, 0.0
    %584 = vadd.xlane.f32.xlu0 %v583
    %v585 = vpop.xlane.xlu0 %584
    %v586 = vsel %vm534, %v527, 0.0
    %587 = vadd.xlane.f32.xlu0 %v586
    %v588 = vpop.xlane.xlu0 %587
    %v589 = vsel %vm534, %v528, 0.0
    %590 = vadd.xlane.f32.xlu0 %v589
    %v591 = vpop.xlane.xlu0 %590
    %v592 = vsel %vm534, %v529, 0.0
    %593 = vadd.xlane.f32.xlu0 %v592
    %v594 = vpop.xlane.xlu0 %593
    %v595 = vsel %vm534, %v530, 0.0
    %596 = vadd.xlane.f32.xlu0 %v595
    %v597 = vpop.xlane.xlu0 %596
    %v598 = vsel %vm534, %v531, 0.0
    %599 = vadd.xlane.f32.xlu0 %v598
    %v600 = vpop.xlane.xlu0 %599
    %v601 = vsel %vm534, %v532, 0.0
    %602 = vadd.xlane.f32.xlu0 %v601
    %v603 = vpop.xlane.xlu0 %602
    %v604 = vsel %vm534, %v533, 0.0
    %605 = vadd.xlane.f32.xlu0 %v604
    %v606 = vpop.xlane.xlu0 %605
    %v607 = vld [vmem:[#allocation6] sm:$0xf]
    %v609 = vperm.slane %v607, 0
    %v610 = vlaneseq
    %v611 = vshrl.u32 %v610, 7
    %613 = vset.pattern.permute.xlu0 %v611
    %614 = vperm.xlu0 %613, %v609
    %v615 = vpop.permute.xlu0 %614
    %v616 = vperm.slane %v607, 1
    %v617 = vlaneseq
    %v618 = vshrl.u32 %v617, 7
    %620 = vset.pattern.permute.xlu0 %v618
    %621 = vperm.xlu0 %620, %v616
    %v622 = vpop.permute.xlu0 %621
    %v623 = vperm.slane %v607, 2
    %v624 = vlaneseq
    %v625 = vshrl.u32 %v624, 7
    %627 = vset.pattern.permute.xlu0 %v625
    %628 = vperm.xlu0 %627, %v623
    %v629 = vpop.permute.xlu0 %628
    %v630 = vperm.slane %v607, 3
    %v631 = vlaneseq
    %v632 = vshrl.u32 %v631, 7
    %634 = vset.pattern.permute.xlu0 %v632
    %635 = vperm.xlu0 %634, %v630
    %v636 = vpop.permute.xlu0 %635
    %v641 = vadd.f32 %v537, %v615
    %v642 = vadd.f32 %v540, %v622
    %v643 = vadd.f32 %v543, %v629
    %v644 = vadd.f32 %v546, %v636
    %v645 = vadd.f32 %v549, %v615
    %v646 = vadd.f32 %v552, %v622
    %v647 = vadd.f32 %v555, %v629
    %v648 = vadd.f32 %v558, %v636
    %v649 = vadd.f32 %v561, %v615
    %v650 = vadd.f32 %v564, %v622
    %v651 = vadd.f32 %v567, %v629
    %v652 = vadd.f32 %v570, %v636
    %v653 = vadd.f32 %v573, %v615
    %v654 = vadd.f32 %v576, %v622
    %v655 = vadd.f32 %v579, %v629
    %v656 = vadd.f32 %v582, %v636
    %v657 = vadd.f32 %v585, %v615
    %v658 = vadd.f32 %v588, %v622
    %v659 = vadd.f32 %v591, %v629
    %v660 = vadd.f32 %v594, %v636
    %v661 = vadd.f32 %v597, %v615
    %v662 = vadd.f32 %v600, %v622
    %v663 = vadd.f32 %v603, %v629
    %v664 = vadd.f32 %v606, %v636
    %689 = vset.pattern.permute.xlu0 0
    %690 = vperm.xlu0 %689, %v641
    %v691 = vpop.permute.xlu0 %690
    %692 = vset.pattern.permute.xlu0 0
    %693 = vperm.xlu0 %692, %v642
    %v694 = vpop.permute.xlu0 %693
    %695 = vset.pattern.permute.xlu0 0
    %696 = vperm.xlu0 %695, %v643
    %v697 = vpop.permute.xlu0 %696
    %698 = vset.pattern.permute.xlu0 0
    %699 = vperm.xlu0 %698, %v644
    %v700 = vpop.permute.xlu0 %699
    %701 = vset.pattern.permute.xlu0 0
    %702 = vperm.xlu0 %701, %v645
    %v703 = vpop.permute.xlu0 %702
    %704 = vset.pattern.permute.xlu0 0
    %705 = vperm.xlu0 %704, %v646
    %v706 = vpop.permute.xlu0 %705
    %707 = vset.pattern.permute.xlu0 0
    %708 = vperm.xlu0 %707, %v647
    %v709 = vpop.permute.xlu0 %708
    %710 = vset.pattern.permute.xlu0 0
    %711 = vperm.xlu0 %710, %v648
    %v712 = vpop.permute.xlu0 %711
    %713 = vset.pattern.permute.xlu0 0
    %714 = vperm.xlu0 %713, %v649
    %v715 = vpop.permute.xlu0 %714
    %716 = vset.pattern.permute.xlu0 0
    %717 = vperm.xlu0 %716, %v650
    %v718 = vpop.permute.xlu0 %717
    %719 = vset.pattern.permute.xlu0 0
    %720 = vperm.xlu0 %719, %v651
    %v721 = vpop.permute.xlu0 %720
    %722 = vset.pattern.permute.xlu0 0
    %723 = vperm.xlu0 %722, %v652
    %v724 = vpop.permute.xlu0 %723
    %725 = vset.pattern.permute.xlu0 0
    %726 = vperm.xlu0 %725, %v653
    %v727 = vpop.permute.xlu0 %726
    %728 = vset.pattern.permute.xlu0 0
    %729 = vperm.xlu0 %728, %v654
    %v730 = vpop.permute.xlu0 %729
    %731 = vset.pattern.permute.xlu0 0
    %732 = vperm.xlu0 %731, %v655
    %v733 = vpop.permute.xlu0 %732
    %734 = vset.pattern.permute.xlu0 0
    %735 = vperm.xlu0 %734, %v656
    %v736 = vpop.permute.xlu0 %735
    %737 = vset.pattern.permute.xlu0 0
    %738 = vperm.xlu0 %737, %v657
    %v739 = vpop.permute.xlu0 %738
    %740 = vset.pattern.permute.xlu0 0
    %741 = vperm.xlu0 %740, %v658
    %v742 = vpop.permute.xlu0 %741
    %743 = vset.pattern.permute.xlu0 0
    %744 = vperm.xlu0 %743, %v659
    %v745 = vpop.permute.xlu0 %744
    %746 = vset.pattern.permute.xlu0 0
    %747 = vperm.xlu0 %746, %v660
    %v748 = vpop.permute.xlu0 %747
    %749 = vset.pattern.permute.xlu0 0
    %750 = vperm.xlu0 %749, %v661
    %v751 = vpop.permute.xlu0 %750
    %752 = vset.pattern.permute.xlu0 0
    %753 = vperm.xlu0 %752, %v662
    %v754 = vpop.permute.xlu0 %753
    %755 = vset.pattern.permute.xlu0 0
    %756 = vperm.xlu0 %755, %v663
    %v757 = vpop.permute.xlu0 %756
    %758 = vset.pattern.permute.xlu0 0
    %759 = vperm.xlu0 %758, %v664
    %v760 = vpop.permute.xlu0 %759
    %v761 = vlaneseq
    %v762 = vand.u32 %v761, 127
    %v763 = vperm.slane %v691, %v762
    %v764 = vperm.slane %v694, %v762
    %v765 = vperm.slane %v697, %v762
    %v766 = vperm.slane %v700, %v762
    %v767 = vperm.slane %v703, %v762
    %v768 = vperm.slane %v706, %v762
    %v769 = vperm.slane %v709, %v762
    %v770 = vperm.slane %v712, %v762
    %v771 = vperm.slane %v715, %v762
    %v772 = vperm.slane %v718, %v762
    %v773 = vperm.slane %v721, %v762
    %v774 = vperm.slane %v724, %v762
    %v775 = vperm.slane %v727, %v762
    %v776 = vperm.slane %v730, %v762
    %v777 = vperm.slane %v733, %v762
    %v778 = vperm.slane %v736, %v762
    %v779 = vperm.slane %v739, %v762
    %v780 = vperm.slane %v742, %v762
    %v781 = vperm.slane %v745, %v762
    %v782 = vperm.slane %v748, %v762
    %v783 = vperm.slane %v751, %v762
    %v784 = vperm.slane %v754, %v762
    %v785 = vperm.slane %v757, %v762
    %v786 = vperm.slane %v760, %v762
    %vm787 = vcmask 1041409
    %v788 = vsel %vm787, %v764, %v763
    %vm789 = vcmask 1042434
    %v790 = vsel %vm789, %v765, %v788
    %vm791 = vcmask 1043459
    %v792 = vsel %vm791, %v766, %v790
    %v793 = vsel %vm787, %v768, %v767
    %v794 = vsel %vm789, %v769, %v793
    %v795 = vsel %vm791, %v770, %v794
    %v796 = vsel %vm787, %v772, %v771
    %v797 = vsel %vm789, %v773, %v796
    %v798 = vsel %vm791, %v774, %v797
    %v799 = vsel %vm787, %v776, %v775
    %v800 = vsel %vm789, %v777, %v799
    %v801 = vsel %vm791, %v778, %v800
    %v802 = vsel %vm787, %v780, %v779
    %v803 = vsel %vm789, %v781, %v802
    %v804 = vsel %vm791, %v782, %v803
    %v805 = vsel %vm787, %v784, %v783
    %v806 = vsel %vm789, %v785, %v805
    %v807 = vsel %vm791, %v786, %v806
    %vm814 = vcmask 35840
    %v815 = vsel %vm814, %v792, -inf
    %816 = vmax.xlane.f32.xlu0 %v815
    %v817 = vpop.xlane.xlu0 %816
    %v818 = vsel %vm814, %v795, -inf
    %819 = vmax.xlane.f32.xlu0 %v818
    %v820 = vpop.xlane.xlu0 %819
    %v821 = vsel %vm814, %v798, -inf
    %822 = vmax.xlane.f32.xlu0 %v821
    %v823 = vpop.xlane.xlu0 %822
    %v824 = vsel %vm814, %v801, -inf
    %825 = vmax.xlane.f32.xlu0 %v824
    %v826 = vpop.xlane.xlu0 %825
    %v827 = vsel %vm814, %v804, -inf
    %828 = vmax.xlane.f32.xlu0 %v827
    %v829 = vpop.xlane.xlu0 %828
    %v830 = vsel %vm814, %v807, -inf
    %831 = vmax.xlane.f32.xlu0 %v830
    %v832 = vpop.xlane.xlu0 %831
    %v839 = vperm.slane %v817, 0
    %v840 = vperm.slane %v817, 1
    %v841 = vperm.slane %v817, 2
    %v842 = vperm.slane %v817, 3
    %v843 = vperm.slane %v820, 0
    %v844 = vperm.slane %v820, 1
    %v845 = vperm.slane %v820, 2
    %v846 = vperm.slane %v820, 3
    %v847 = vperm.slane %v823, 0
    %v848 = vperm.slane %v823, 1
    %v849 = vperm.slane %v823, 2
    %v850 = vperm.slane %v823, 3
    %v851 = vperm.slane %v826, 0
    %v852 = vperm.slane %v826, 1
    %v853 = vperm.slane %v826, 2
    %v854 = vperm.slane %v826, 3
    %v855 = vperm.slane %v829, 0
    %v856 = vperm.slane %v829, 1
    %v857 = vperm.slane %v829, 2
    %v858 = vperm.slane %v829, 3
    %v859 = vperm.slane %v832, 0
    %v860 = vperm.slane %v832, 1
    %v861 = vperm.slane %v832, 2
    %v862 = vperm.slane %v832, 3
    %v887 = vsub.f32 %v641, %v839
    %v888 = vsub.f32 %v642, %v840
    %v889 = vsub.f32 %v643, %v841
    %v890 = vsub.f32 %v644, %v842
    %v891 = vsub.f32 %v645, %v843
    %v892 = vsub.f32 %v646, %v844
    %v893 = vsub.f32 %v647, %v845
    %v894 = vsub.f32 %v648, %v846
    %v895 = vsub.f32 %v649, %v847
    %v896 = vsub.f32 %v650, %v848
    %v897 = vsub.f32 %v651, %v849
    %v898 = vsub.f32 %v652, %v850
    %v899 = vsub.f32 %v653, %v851
    %v900 = vsub.f32 %v654, %v852
    %v901 = vsub.f32 %v655, %v853
    %v902 = vsub.f32 %v656, %v854
    %v903 = vsub.f32 %v657, %v855
    %v904 = vsub.f32 %v658, %v856
    %v905 = vsub.f32 %v659, %v857
    %v906 = vsub.f32 %v660, %v858
    %v907 = vsub.f32 %v661, %v859
    %v908 = vsub.f32 %v662, %v860
    %v909 = vsub.f32 %v663, %v861
    %v910 = vsub.f32 %v664, %v862
    %v911 = vmul.f32 %v887, 1.442695
    %v912 = vpow.pop %v911
    %v913 = vmul.f32 %v888, 1.442695
    %v914 = vpow.pop %v913
    %v915 = vmul.f32 %v889, 1.442695
    %v916 = vpow.pop %v915
    %v917 = vmul.f32 %v890, 1.442695
    %v918 = vpow.pop %v917
    %v919 = vmul.f32 %v891, 1.442695
    %v920 = vpow.pop %v919
    %v921 = vmul.f32 %v892, 1.442695
    %v922 = vpow.pop %v921
    %v923 = vmul.f32 %v893, 1.442695
    %v924 = vpow.pop %v923
    %v925 = vmul.f32 %v894, 1.442695
    %v926 = vpow.pop %v925
    %v927 = vmul.f32 %v895, 1.442695
    %v928 = vpow.pop %v927
    %v929 = vmul.f32 %v896, 1.442695
    %v930 = vpow.pop %v929
    %v931 = vmul.f32 %v897, 1.442695
    %v932 = vpow.pop %v931
    %v933 = vmul.f32 %v898, 1.442695
    %v934 = vpow.pop %v933
    %v935 = vmul.f32 %v899, 1.442695
    %v936 = vpow.pop %v935
    %v937 = vmul.f32 %v900, 1.442695
    %v938 = vpow.pop %v937
    %v939 = vmul.f32 %v901, 1.442695
    %v940 = vpow.pop %v939
    %v941 = vmul.f32 %v902, 1.442695
    %v942 = vpow.pop %v941
    %v943 = vmul.f32 %v903, 1.442695
    %v944 = vpow.pop %v943
    %v945 = vmul.f32 %v904, 1.442695
    %v946 = vpow.pop %v945
    %v947 = vmul.f32 %v905, 1.442695
    %v948 = vpow.pop %v947
    %v949 = vmul.f32 %v906, 1.442695
    %v950 = vpow.pop %v949
    %v951 = vmul.f32 %v907, 1.442695
    %v952 = vpow.pop %v951
    %v953 = vmul.f32 %v908, 1.442695
    %v954 = vpow.pop %v953
    %v955 = vmul.f32 %v909, 1.442695
    %v956 = vpow.pop %v955
    %v957 = vmul.f32 %v910, 1.442695
    %v958 = vpow.pop %v957
    %983 = vset.pattern.permute.xlu0 0
    %984 = vperm.xlu0 %983, %v912
    %v985 = vpop.permute.xlu0 %984
    %986 = vset.pattern.permute.xlu0 0
    %987 = vperm.xlu0 %986, %v914
    %v988 = vpop.permute.xlu0 %987
    %989 = vset.pattern.permute.xlu0 0
    %990 = vperm.xlu0 %989, %v916
    %v991 = vpop.permute.xlu0 %990
    %992 = vset.pattern.permute.xlu0 0
    %993 = vperm.xlu0 %992, %v918
    %v994 = vpop.permute.xlu0 %993
    %995 = vset.pattern.permute.xlu0 0
    %996 = vperm.xlu0 %995, %v920
    %v997 = vpop.permute.xlu0 %996
    %998 = vset.pattern.permute.xlu0 0
    %999 = vperm.xlu0 %998, %v922
    %v1000 = vpop.permute.xlu0 %999
    %1001 = vset.pattern.permute.xlu0 0
    %1002 = vperm.xlu0 %1001, %v924
    %v1003 = vpop.permute.xlu0 %1002
    %1004 = vset.pattern.permute.xlu0 0
    %1005 = vperm.xlu0 %1004, %v926
    %v1006 = vpop.permute.xlu0 %1005
    %1007 = vset.pattern.permute.xlu0 0
    %1008 = vperm.xlu0 %1007, %v928
    %v1009 = vpop.permute.xlu0 %1008
    %1010 = vset.pattern.permute.xlu0 0
    %1011 = vperm.xlu0 %1010, %v930
    %v1012 = vpop.permute.xlu0 %1011
    %1013 = vset.pattern.permute.xlu0 0
    %1014 = vperm.xlu0 %1013, %v932
    %v1015 = vpop.permute.xlu0 %1014
    %1016 = vset.pattern.permute.xlu0 0
    %1017 = vperm.xlu0 %1016, %v934
    %v1018 = vpop.permute.xlu0 %1017
    %1019 = vset.pattern.permute.xlu0 0
    %1020 = vperm.xlu0 %1019, %v936
    %v1021 = vpop.permute.xlu0 %1020
    %1022 = vset.pattern.permute.xlu0 0
    %1023 = vperm.xlu0 %1022, %v938
    %v1024 = vpop.permute.xlu0 %1023
    %1025 = vset.pattern.permute.xlu0 0
    %1026 = vperm.xlu0 %1025, %v940
    %v1027 = vpop.permute.xlu0 %1026
    %1028 = vset.pattern.permute.xlu0 0
    %1029 = vperm.xlu0 %1028, %v942
    %v1030 = vpop.permute.xlu0 %1029
    %1031 = vset.pattern.permute.xlu0 0
    %1032 = vperm.xlu0 %1031, %v944
    %v1033 = vpop.permute.xlu0 %1032
    %1034 = vset.pattern.permute.xlu0 0
    %1035 = vperm.xlu0 %1034, %v946
    %v1036 = vpop.permute.xlu0 %1035
    %1037 = vset.pattern.permute.xlu0 0
    %1038 = vperm.xlu0 %1037, %v948
    %v1039 = vpop.permute.xlu0 %1038
    %1040 = vset.pattern.permute.xlu0 0
    %1041 = vperm.xlu0 %1040, %v950
    %v1042 = vpop.permute.xlu0 %1041
    %1043 = vset.pattern.permute.xlu0 0
    %1044 = vperm.xlu0 %1043, %v952
    %v1045 = vpop.permute.xlu0 %1044
    %1046 = vset.pattern.permute.xlu0 0
    %1047 = vperm.xlu0 %1046, %v954
    %v1048 = vpop.permute.xlu0 %1047
    %1049 = vset.pattern.permute.xlu0 0
    %1050 = vperm.xlu0 %1049, %v956
    %v1051 = vpop.permute.xlu0 %1050
    %1052 = vset.pattern.permute.xlu0 0
    %1053 = vperm.xlu0 %1052, %v958
    %v1054 = vpop.permute.xlu0 %1053
    %v1055 = vperm.slane %v985, %v762
    %v1056 = vperm.slane %v988, %v762
    %v1057 = vperm.slane %v991, %v762
    %v1058 = vperm.slane %v994, %v762
    %v1059 = vperm.slane %v997, %v762
    %v1060 = vperm.slane %v1000, %v762
    %v1061 = vperm.slane %v1003, %v762
    %v1062 = vperm.slane %v1006, %v762
    %v1063 = vperm.slane %v1009, %v762
    %v1064 = vperm.slane %v1012, %v762
    %v1065 = vperm.slane %v1015, %v762
    %v1066 = vperm.slane %v1018, %v762
    %v1067 = vperm.slane %v1021, %v762
    %v1068 = vperm.slane %v1024, %v762
    %v1069 = vperm.slane %v1027, %v762
    %v1070 = vperm.slane %v1030, %v762
    %v1071 = vperm.slane %v1033, %v762
    %v1072 = vperm.slane %v1036, %v762
    %v1073 = vperm.slane %v1039, %v762
    %v1074 = vperm.slane %v1042, %v762
    %v1075 = vperm.slane %v1045, %v762
    %v1076 = vperm.slane %v1048, %v762
    %v1077 = vperm.slane %v1051, %v762
    %v1078 = vperm.slane %v1054, %v762
    %v1079 = vsel %vm787, %v1056, %v1055
    %v1080 = vsel %vm789, %v1057, %v1079
    %v1081 = vsel %vm791, %v1058, %v1080
    %v1082 = vsel %vm787, %v1060, %v1059
    %v1083 = vsel %vm789, %v1061, %v1082
    %v1084 = vsel %vm791, %v1062, %v1083
    %v1085 = vsel %vm787, %v1064, %v1063
    %v1086 = vsel %vm789, %v1065, %v1085
    %v1087 = vsel %vm791, %v1066, %v1086
    %v1088 = vsel %vm787, %v1068, %v1067
    %v1089 = vsel %vm789, %v1069, %v1088
    %v1090 = vsel %vm791, %v1070, %v1089
    %v1091 = vsel %vm787, %v1072, %v1071
    %v1092 = vsel %vm789, %v1073, %v1091
    %v1093 = vsel %vm791, %v1074, %v1092
    %v1094 = vsel %vm787, %v1076, %v1075
    %v1095 = vsel %vm789, %v1077, %v1094
    %v1096 = vsel %vm791, %v1078, %v1095
    %v1103 = vsel %vm814, %v1081, 0.0
    %1104 = vadd.xlane.f32.xlu0 %v1103
    %v1105 = vpop.xlane.xlu0 %1104
    %v1106 = vsel %vm814, %v1084, 0.0
    %1107 = vadd.xlane.f32.xlu0 %v1106
    %v1108 = vpop.xlane.xlu0 %1107
    %v1109 = vsel %vm814, %v1087, 0.0
    %1110 = vadd.xlane.f32.xlu0 %v1109
    %v1111 = vpop.xlane.xlu0 %1110
    %v1112 = vsel %vm814, %v1090, 0.0
    %1113 = vadd.xlane.f32.xlu0 %v1112
    %v1114 = vpop.xlane.xlu0 %1113
    %v1115 = vsel %vm814, %v1093, 0.0
    %1116 = vadd.xlane.f32.xlu0 %v1115
    %v1117 = vpop.xlane.xlu0 %1116
    %v1118 = vsel %vm814, %v1096, 0.0
    %1119 = vadd.xlane.f32.xlu0 %v1118
    %v1120 = vpop.xlane.xlu0 %1119
    %v1121 = vlog2.pop %v1105
    %v1122 = vmul.f32 %v1121, 0.6931472
    %v1123 = vlog2.pop %v1108
    %v1124 = vmul.f32 %v1123, 0.6931472
    %v1125 = vlog2.pop %v1111
    %v1126 = vmul.f32 %v1125, 0.6931472
    %v1127 = vlog2.pop %v1114
    %v1128 = vmul.f32 %v1127, 0.6931472
    %v1129 = vlog2.pop %v1117
    %v1130 = vmul.f32 %v1129, 0.6931472
    %v1131 = vlog2.pop %v1120
    %v1132 = vmul.f32 %v1131, 0.6931472
    %v1133 = vadd.f32 %v817, %v1122
    %v1134 = vadd.f32 %v820, %v1124
    %v1135 = vadd.f32 %v823, %v1126
    %v1136 = vadd.f32 %v826, %v1128
    %v1137 = vadd.f32 %v829, %v1130
    %v1138 = vadd.f32 %v832, %v1132
    %v1145 = vperm.slane %v1133, 0
    %v1146 = vperm.slane %v1133, 1
    %v1147 = vperm.slane %v1133, 2
    %v1148 = vperm.slane %v1133, 3
    %v1149 = vperm.slane %v1134, 0
    %v1150 = vperm.slane %v1134, 1
    %v1151 = vperm.slane %v1134, 2
    %v1152 = vperm.slane %v1134, 3
    %v1153 = vperm.slane %v1135, 0
    %v1154 = vperm.slane %v1135, 1
    %v1155 = vperm.slane %v1135, 2
    %v1156 = vperm.slane %v1135, 3
    %v1157 = vperm.slane %v1136, 0
    %v1158 = vperm.slane %v1136, 1
    %v1159 = vperm.slane %v1136, 2
    %v1160 = vperm.slane %v1136, 3
    %v1161 = vperm.slane %v1137, 0
    %v1162 = vperm.slane %v1137, 1
    %v1163 = vperm.slane %v1137, 2
    %v1164 = vperm.slane %v1137, 3
    %v1165 = vperm.slane %v1138, 0
    %v1166 = vperm.slane %v1138, 1
    %v1167 = vperm.slane %v1138, 2
    %v1168 = vperm.slane %v1138, 3
    %v1193 = vsub.f32 %v641, %v1145
    %v1194 = vsub.f32 %v642, %v1146
    %v1195 = vsub.f32 %v643, %v1147
    %v1196 = vsub.f32 %v644, %v1148
    %v1197 = vsub.f32 %v645, %v1149
    %v1198 = vsub.f32 %v646, %v1150
    %v1199 = vsub.f32 %v647, %v1151
    %v1200 = vsub.f32 %v648, %v1152
    %v1201 = vsub.f32 %v649, %v1153
    %v1202 = vsub.f32 %v650, %v1154
    %v1203 = vsub.f32 %v651, %v1155
    %v1204 = vsub.f32 %v652, %v1156
    %v1205 = vsub.f32 %v653, %v1157
    %v1206 = vsub.f32 %v654, %v1158
    %v1207 = vsub.f32 %v655, %v1159
    %v1208 = vsub.f32 %v656, %v1160
    %v1209 = vsub.f32 %v657, %v1161
    %v1210 = vsub.f32 %v658, %v1162
    %v1211 = vsub.f32 %v659, %v1163
    %v1212 = vsub.f32 %v660, %v1164
    %v1213 = vsub.f32 %v661, %v1165
    %v1214 = vsub.f32 %v662, %v1166
    %v1215 = vsub.f32 %v663, %v1167
    %v1216 = vsub.f32 %v664, %v1168
    %1241 = vset.pattern.permute.xlu0 0
    %1242 = vperm.xlu0 %1241, %v1193
    %v1243 = vpop.permute.xlu0 %1242
    %1244 = vset.pattern.permute.xlu0 0
    %1245 = vperm.xlu0 %1244, %v1194
    %v1246 = vpop.permute.xlu0 %1245
    %1247 = vset.pattern.permute.xlu0 0
    %1248 = vperm.xlu0 %1247, %v1195
    %v1249 = vpop.permute.xlu0 %1248
    %1250 = vset.pattern.permute.xlu0 0
    %1251 = vperm.xlu0 %1250, %v1196
    %v1252 = vpop.permute.xlu0 %1251
    %1253 = vset.pattern.permute.xlu0 0
    %1254 = vperm.xlu0 %1253, %v1197
    %v1255 = vpop.permute.xlu0 %1254
    %1256 = vset.pattern.permute.xlu0 0
    %1257 = vperm.xlu0 %1256, %v1198
    %v1258 = vpop.permute.xlu0 %1257
    %1259 = vset.pattern.permute.xlu0 0
    %1260 = vperm.xlu0 %1259, %v1199
    %v1261 = vpop.permute.xlu0 %1260
    %1262 = vset.pattern.permute.xlu0 0
    %1263 = vperm.xlu0 %1262, %v1200
    %v1264 = vpop.permute.xlu0 %1263
    %1265 = vset.pattern.permute.xlu0 0
    %1266 = vperm.xlu0 %1265, %v1201
    %v1267 = vpop.permute.xlu0 %1266
    %1268 = vset.pattern.permute.xlu0 0
    %1269 = vperm.xlu0 %1268, %v1202
    %v1270 = vpop.permute.xlu0 %1269
    %1271 = vset.pattern.permute.xlu0 0
    %1272 = vperm.xlu0 %1271, %v1203
    %v1273 = vpop.permute.xlu0 %1272
    %1274 = vset.pattern.permute.xlu0 0
    %1275 = vperm.xlu0 %1274, %v1204
    %v1276 = vpop.permute.xlu0 %1275
    %1277 = vset.pattern.permute.xlu0 0
    %1278 = vperm.xlu0 %1277, %v1205
    %v1279 = vpop.permute.xlu0 %1278
    %1280 = vset.pattern.permute.xlu0 0
    %1281 = vperm.xlu0 %1280, %v1206
    %v1282 = vpop.permute.xlu0 %1281
    %1283 = vset.pattern.permute.xlu0 0
    %1284 = vperm.xlu0 %1283, %v1207
    %v1285 = vpop.permute.xlu0 %1284
    %1286 = vset.pattern.permute.xlu0 0
    %1287 = vperm.xlu0 %1286, %v1208
    %v1288 = vpop.permute.xlu0 %1287
    %1289 = vset.pattern.permute.xlu0 0
    %1290 = vperm.xlu0 %1289, %v1209
    %v1291 = vpop.permute.xlu0 %1290
    %1292 = vset.pattern.permute.xlu0 0
    %1293 = vperm.xlu0 %1292, %v1210
    %v1294 = vpop.permute.xlu0 %1293
    %1295 = vset.pattern.permute.xlu0 0
    %1296 = vperm.xlu0 %1295, %v1211
    %v1297 = vpop.permute.xlu0 %1296
    %1298 = vset.pattern.permute.xlu0 0
    %1299 = vperm.xlu0 %1298, %v1212
    %v1300 = vpop.permute.xlu0 %1299
    %1301 = vset.pattern.permute.xlu0 0
    %1302 = vperm.xlu0 %1301, %v1213
    %v1303 = vpop.permute.xlu0 %1302
    %1304 = vset.pattern.permute.xlu0 0
    %1305 = vperm.xlu0 %1304, %v1214
    %v1306 = vpop.permute.xlu0 %1305
    %1307 = vset.pattern.permute.xlu0 0
    %1308 = vperm.xlu0 %1307, %v1215
    %v1309 = vpop.permute.xlu0 %1308
    %1310 = vset.pattern.permute.xlu0 0
    %1311 = vperm.xlu0 %1310, %v1216
    %v1312 = vpop.permute.xlu0 %1311
    %v1313 = vperm.slane %v1243, %v762
    %v1314 = vperm.slane %v1246, %v762
    %v1315 = vperm.slane %v1249, %v762
    %v1316 = vperm.slane %v1252, %v762
    %v1317 = vperm.slane %v1255, %v762
    %v1318 = vperm.slane %v1258, %v762
    %v1319 = vperm.slane %v1261, %v762
    %v1320 = vperm.slane %v1264, %v762
    %v1321 = vperm.slane %v1267, %v762
    %v1322 = vperm.slane %v1270, %v762
    %v1323 = vperm.slane %v1273, %v762
    %v1324 = vperm.slane %v1276, %v762
    %v1325 = vperm.slane %v1279, %v762
    %v1326 = vperm.slane %v1282, %v762
    %v1327 = vperm.slane %v1285, %v762
    %v1328 = vperm.slane %v1288, %v762
    %v1329 = vperm.slane %v1291, %v762
    %v1330 = vperm.slane %v1294, %v762
    %v1331 = vperm.slane %v1297, %v762
    %v1332 = vperm.slane %v1300, %v762
    %v1333 = vperm.slane %v1303, %v762
    %v1334 = vperm.slane %v1306, %v762
    %v1335 = vperm.slane %v1309, %v762
    %v1336 = vperm.slane %v1312, %v762
    %v1337 = vsel %vm787, %v1314, %v1313
    %v1338 = vsel %vm789, %v1315, %v1337
    %v1339 = vsel %vm791, %v1316, %v1338
    %v1340 = vsel %vm787, %v1318, %v1317
    %v1341 = vsel %vm789, %v1319, %v1340
    %v1342 = vsel %vm791, %v1320, %v1341
    %v1343 = vsel %vm787, %v1322, %v1321
    %v1344 = vsel %vm789, %v1323, %v1343
    %v1345 = vsel %vm791, %v1324, %v1344
    %v1346 = vsel %vm787, %v1326, %v1325
    %v1347 = vsel %vm789, %v1327, %v1346
    %v1348 = vsel %vm791, %v1328, %v1347
    %v1349 = vsel %vm787, %v1330, %v1329
    %v1350 = vsel %vm789, %v1331, %v1349
    %v1351 = vsel %vm791, %v1332, %v1350
    %v1352 = vsel %vm787, %v1334, %v1333
    %v1353 = vsel %vm789, %v1335, %v1352
    %v1354 = vsel %vm791, %v1336, %v1353
    %1361 = vst.msk [vmem:[%s7] sm:$0xf] %vm814, %v1339
    %1362 = vst.msk [vmem:[%s7 + $0x4] sm:$0xf] %vm814, %v1342
    %1363 = vst.msk [vmem:[%s7 + $0x8] sm:$0xf] %vm814, %v1345
    %1364 = vst.msk [vmem:[%s7 + $0xc] sm:$0xf] %vm814, %v1348
    %1365 = vst.msk [vmem:[%s7 + $0x10] sm:$0xf] %vm814, %v1351
    %1366 = vst.msk [vmem:[%s7 + $0x14] sm:$0xf] %vm814, %v1354
    // Predicated region
    $region50: #{tpu_custom_call.1} parent=1 // pred_check
      _
    $region51: #{tpu_custom_call.1} parent=1 // pred_check_branch
      %1368 = sbr.rel (0) target = $region53
    $region52: #{tpu_custom_call.1} parent=1 // pred_region
      _
    $region53: #{tpu_custom_call.1} parent=1 // pred_fallthru
      _
    // Predicated region
    $region54: #{tpu_custom_call.1} parent=1 // pred_check
      _
    $region55: #{tpu_custom_call.1} parent=1 // pred_check_branch
      %1370 = sbr.rel (0) target = $region57
    $region56: #{tpu_custom_call.1} parent=1 // pred_region
      _
    $region57: #{tpu_custom_call.1} parent=1 // pred_fallthru
      _
    %1371 = vsyncpa [#allocation3], 1
    %1372 = vsyncpa [#allocation5], 1
    %1373 = vsyncpa [#allocation8], 1

</llo_original>
